<compile_context>
chip_gen: v7x
topology: tpu7x:2x2x1
jax: 0.10.0
libtpu: 0.0.40
codegen_flags: <defaults>
</compile_context>

<pallas_src>
import jax
import jax.numpy as jnp
from jax.experimental import pallas as pl
from jax.experimental.pallas import tpu as pltpu


def _round_up(x, m):
    return (x + m - 1) // m * m


def _leaky_relu_02(x):
    # slope 0.2 < 1  =>  LeakyReLU(x) == max(x, 0.2*x)   (2 VALU ops, no select)
    return jnp.maximum(x, 0.2 * x)


def discriminator_kernel(y_ref, cond_ref, w1y_ref, w1c_ref, b1_ref,
                         w2_ref, b2_ref, w3_ref, b3_ref, o_ref):
    """One batch tile of the fused 3-layer MLP.

    y_ref    : (TB, 1)     f32
    cond_ref : (TB, D)     f32
    w1y_ref  : (1, H1p)    f32   (row of W1 that multiplies y)
    w1c_ref  : (D, H1p)    f32   (rows of W1 that multiply cond)
    b1_ref   : (1, H1p)    f32
    w2_ref   : (H1p, H2p)  bf16
    b2_ref   : (1, H2p)    f32
    w3_ref   : (1, H2p)    f32   (last layer as a row vector)
    b3_ref   : (1, 1)      f32   (SMEM scalar)
    o_ref    : (1, TB)     f32   (lane-dense output slab)
    """
    # ---- Layer 1: concat folded in ( x @ W1  ==  cond @ W1_c + y * W1_y ) ----
    h1 = jnp.dot(cond_ref[...], w1c_ref[...],
                 preferred_element_type=jnp.float32)              # MXU (tiny K)
    h1 = _leaky_relu_02(h1 + y_ref[...] * w1y_ref[...] + b1_ref[...])
    # Dropout(0.3) -> identity (eval semantics).

    # ---- Layer 2: bf16 MXU matmul, f32 accumulation ----
    h2 = jnp.dot(h1.astype(jnp.bfloat16), w2_ref[...],
                 preferred_element_type=jnp.float32)
    h2 = _leaky_relu_02(h2 + b2_ref[...])                         # (TB, H2p)
    # Dropout(0.3) -> identity (eval semantics).

    # ---- Layer 3 (N=1): VPU multiply + XLU row-reduce instead of MXU ----
    h3 = jnp.sum(h2 * w3_ref[...], axis=-1) + b3_ref[0, 0]        # (TB,)
    o_ref[...] = jax.nn.sigmoid(h3)[None, :]                      # lane-dense (1, TB)


def _pick_tb(B, D, H1p, H2p, weight_bytes):
    """Pick the batch tile: VMEM-budget driven, padding-minimizing, even-step
    for multi-step grids (v7x megacore balance)."""
    # Budget safe for every generation's scoped VMEM default (v5e: 16 MiB).
    budget = (12 << 20) - weight_bytes
    # Bytes in flight per batch row: double-buffered y/cond/out + f32
    # intermediates (h1, h2) + bf16 recast of h1.
    per_row = 2 * (D + 1 + 1) * 4 + (H1p + H2p) * 4 + H1p * 2
    tb_max = max(128, min(2048, (budget // per_row) // 128 * 128))
    n_steps = max(1, pl.cdiv(B, tb_max))
    # v7x: even step count so both TensorCores get equal work when multi-step.
    if n_steps > 1 and n_steps % 2 == 1:
        n_steps += 1
    return _round_up(pl.cdiv(B, n_steps), 128)


def discriminator_forward(y, cond, kparams):
    """Wrapper: batch-tiled pallas_call; returns (B, 1) like the PyTorch module."""
    w1y, w1c, b1, w2, b2, w3, b3 = kparams
    B = y.shape[0]
    D = cond.shape[1]
    H1p, H2p = w2.shape

    # Resident (single-buffered) weights/biases footprint.
    weight_bytes = (H1p * 4 + D * H1p * 4 + H1p * 4        # w1_y, w1_c, b1 (f32)
                    + H1p * H2p * 2                         # w2 (bf16)
                    + H2p * 4 + H2p * 4 + 4)                # b2, w3, b3

    TB = _pick_tb(B, D, H1p, H2p, weight_bytes)
    B_pad = _round_up(B, TB)
    grid = (B_pad // TB,)

    y = y.astype(jnp.float32)
    cond = cond.astype(jnp.float32)
    if B_pad != B:
        y = jnp.pad(y, ((0, B_pad - B), (0, 0)))
        cond = jnp.pad(cond, ((0, B_pad - B), (0, 0)))

    # Explicit VMEM budget: double-buffered streaming tiles + single-buffered
    # weights + f32/bf16 intermediates + compiler scratch headroom.
    vmem_bytes = int(
        2 * TB * (D + 1) * 4            # y + cond (double-buffered)
        + 2 * TB * 4                    # output slab (double-buffered)
        + TB * (H1p + H2p) * 4          # f32 h1/h2 intermediates
        + TB * H1p * 2                  # bf16 recast of h1
        + weight_bytes
    ) + (4 << 20)
    vmem_limit_bytes = min(max(vmem_bytes, 16 << 20), 64 << 20)

    def resident(shape):
        # Constant index_map -> never re-fetched -> single buffer is enough.
        return pl.BlockSpec(shape, lambda i: (0, 0), pipeline_mode=pl.Buffered(1))

    out = pl.pallas_call(
        discriminator_kernel,
        out_shape=jax.ShapeDtypeStruct((1, B_pad), jnp.float32),
        grid=grid,
        in_specs=[
            pl.BlockSpec((TB, 1), lambda i: (i, 0)),    # y
            pl.BlockSpec((TB, D), lambda i: (i, 0)),    # cond
            resident((1, H1p)),                         # w1_y row (f32)
            resident((D, H1p)),                         # w1_cond (f32)
            resident((1, H1p)),                         # b1
            resident((H1p, H2p)),                       # w2 (bf16)
            resident((1, H2p)),                         # b2
            resident((1, H2p)),                         # w3 row
            pl.BlockSpec(memory_space=pltpu.MemorySpace.SMEM),  # b3 scalar
        ],
        out_specs=pl.BlockSpec((1, TB), lambda i: (0, i)),
        compiler_params=pltpu.CompilerParams(
            dimension_semantics=("parallel",),
            vmem_limit_bytes=vmem_limit_bytes),
    )(y, cond, w1y, w1c, b1, w2, b2, w3, b3)

    return out[0, :B].reshape(B, 1)


def init_params(key, condition_dim, hidden_size):
    """PyTorch-like init: U(-1/sqrt(fan_in), 1/sqrt(fan_in)); weights stored (in, out)."""
    in1 = condition_dim + 1
    h = hidden_size
    h2 = hidden_size // 2
    ks = jax.random.split(key, 6)

    def lin(kw, kb, fan_in, fan_out):
        bound = 1.0 / jnp.sqrt(jnp.float32(fan_in))
        w = jax.random.uniform(kw, (fan_in, fan_out), jnp.float32, -bound, bound)
        b = jax.random.uniform(kb, (1, fan_out), jnp.float32, -bound, bound)
        return w, b

    w1, b1 = lin(ks[0], ks[1], in1, h)
    w2, b2 = lin(ks[2], ks[3], h, h2)
    w3, b3 = lin(ks[4], ks[5], h2, 1)
    return (w1, b1, w2, b2, w3, b3)


def prepare_params(params, condition_dim, hidden_size):
    """One-time host-side layout prep: split W1 (concat fusion), zero-pad hidden
    dims to multiples of 128, cast only the layer-2 MXU operand to bf16, and
    place b3 as an SMEM scalar."""
    w1, b1, w2, b2, w3, b3 = params
    D = condition_dim
    H1, H2 = hidden_size, hidden_size // 2
    H1p = _round_up(H1, 128)
    H2p = _round_up(H2, 128)

    w1_y = jnp.zeros((1, H1p), jnp.float32).at[:, :H1].set(w1[0:1, :])
    w1_c = jnp.zeros((D, H1p), jnp.float32).at[:, :H1].set(w1[1:, :])   # f32 (tiny K)
    b1p = jnp.zeros((1, H1p), jnp.float32).at[:, :H1].set(b1)
    w2p = (jnp.zeros((H1p, H2p), jnp.float32).at[:H1, :H2].set(w2)
           .astype(jnp.bfloat16))
    b2p = jnp.zeros((1, H2p), jnp.float32).at[:, :H2].set(b2)
    w3p = jnp.zeros((1, H2p), jnp.float32).at[:, :H2].set(w3[:, 0][None, :])
    b3p = b3.reshape(1, 1).astype(jnp.float32)
    return (w1_y, w1_c, b1p, w2p, b2p, w3p, b3p)


if __name__ == "__main__":
    condition_dim = 4
    hidden_size = 32
    batch = 8

    key = jax.random.PRNGKey(0)
    k_y, k_c, k_p = jax.random.split(key, 3)

    # y: the (scaled) target value, shape (B, 1); cond: conditioning vector.
    y = jax.random.uniform(k_y, (batch, 1), jnp.float32)
    cond = jax.random.normal(k_c, (batch, condition_dim), jnp.float32)

    params = init_params(k_p, condition_dim, hidden_size)
    kparams = prepare_params(params, condition_dim, hidden_size)

    out = discriminator_forward(y, cond, kparams)
    out = jax.block_until_ready(out)

    # Pure-JAX f32 reference (only W2 is bf16 in the kernel -> modest tolerance).
    w1, b1, w2, b2, w3, b3 = params
    x = jnp.concatenate([y, cond], axis=1)
    h = x @ w1 + b1
    h = jnp.where(h > 0, h, 0.2 * h)
    h = h @ w2 + b2
    h = jnp.where(h > 0, h, 0.2 * h)
    ref = jax.nn.sigmoid(h @ w3 + b3)

    assert out.shape == (batch, 1)
    assert bool(jnp.all((out >= 0.0) & (out <= 1.0)))
    assert float(jnp.max(jnp.abs(out - ref))) < 2e-2
    print("KERNEL_OK")
</pallas_src>

<mosaic_0001>
module attributes {stable_mosaic.version = 11 : i64} {
  func.func @discriminator_kernel(%arg0: i32, %arg1: memref<128x1xf32, #tpu.memory_space<vmem>>, %arg2: memref<128x4xf32, #tpu.memory_space<vmem>>, %arg3: memref<1x128xf32, #tpu.memory_space<vmem>>, %arg4: memref<4x128xf32, #tpu.memory_space<vmem>>, %arg5: memref<1x128xf32, #tpu.memory_space<vmem>>, %arg6: memref<128x128xbf16, #tpu.memory_space<vmem>>, %arg7: memref<1x128xf32, #tpu.memory_space<vmem>>, %arg8: memref<1x128xf32, #tpu.memory_space<vmem>>, %arg9: memref<1x1xf32, #tpu.memory_space<smem>>, %arg10: memref<1x128xf32, #tpu.memory_space<vmem>>) attributes {dimension_semantics = [#tpu.dimension_semantics<parallel>], iteration_bounds = array<i64: 1>, scalar_prefetch = 0 : i64, scratch_operands = 0 : i64, tpu.core_type = #tpu.core_type<tc>, window_params = [{transform_indices = @transform_0, window_bounds = array<i64: 128, 1>}, {transform_indices = @transform_1, window_bounds = array<i64: 128, 4>}, {pipeline_mode = #tpu.pipeline_mode<synchronous>, transform_indices = @transform_2, window_bounds = array<i64: 1, 128>}, {pipeline_mode = #tpu.pipeline_mode<synchronous>, transform_indices = @transform_3, window_bounds = array<i64: 4, 128>}, {pipeline_mode = #tpu.pipeline_mode<synchronous>, transform_indices = @transform_4, window_bounds = array<i64: 1, 128>}, {pipeline_mode = #tpu.pipeline_mode<synchronous>, transform_indices = @transform_5, window_bounds = array<i64: 128, 128>}, {pipeline_mode = #tpu.pipeline_mode<synchronous>, transform_indices = @transform_6, window_bounds = array<i64: 1, 128>}, {pipeline_mode = #tpu.pipeline_mode<synchronous>, transform_indices = @transform_7, window_bounds = array<i64: 1, 128>}, {transform_indices = @transform_8, window_bounds = array<i64: 1, 1>}, {transform_indices = @transform_9, window_bounds = array<i64: 1, 128>}]} {
    %c0 = arith.constant 0 : index
    %c0_0 = arith.constant 0 : index
    %0 = vector.load %arg2[%c0, %c0_0] : memref<128x4xf32, #tpu.memory_space<vmem>>, vector<128x4xf32>
    %c0_1 = arith.constant 0 : index
    %c0_2 = arith.constant 0 : index
    %1 = vector.load %arg4[%c0_1, %c0_2] : memref<4x128xf32, #tpu.memory_space<vmem>>, vector<4x128xf32>
    %cst = arith.constant dense<0.000000e+00> : vector<128x128xf32>
    %2 = tpu.matmul %0, %1, %cst {dimension_numbers = #tpu.dot_dimension_numbers<[1], [0], [0], [1], [0, 0, 1, 1], [], []>} : vector<128x4xf32>, vector<4x128xf32>, vector<128x128xf32> -> vector<128x128xf32>
    %c0_3 = arith.constant 0 : index
    %c0_4 = arith.constant 0 : index
    %3 = vector.load %arg1[%c0_3, %c0_4] : memref<128x1xf32, #tpu.memory_space<vmem>>, vector<128x1xf32>
    %c0_5 = arith.constant 0 : index
    %c0_6 = arith.constant 0 : index
    %4 = vector.load %arg3[%c0_5, %c0_6] : memref<1x128xf32, #tpu.memory_space<vmem>>, vector<1x128xf32>
    %5 = vector.broadcast %3 : vector<128x1xf32> to vector<128x128xf32>
    %6 = vector.broadcast %4 : vector<1x128xf32> to vector<128x128xf32>
    %7 = arith.mulf %5, %6 : vector<128x128xf32>
    %8 = arith.addf %2, %7 : vector<128x128xf32>
    %c0_7 = arith.constant 0 : index
    %c0_8 = arith.constant 0 : index
    %9 = vector.load %arg5[%c0_7, %c0_8] : memref<1x128xf32, #tpu.memory_space<vmem>>, vector<1x128xf32>
    %10 = vector.broadcast %9 : vector<1x128xf32> to vector<128x128xf32>
    %11 = arith.addf %8, %10 : vector<128x128xf32>
    %cst_9 = arith.constant 2.000000e-01 : f32
    %12 = vector.broadcast %cst_9 : f32 to vector<128x128xf32>
    %13 = arith.mulf %12, %11 : vector<128x128xf32>
    %14 = arith.maximumf %11, %13 : vector<128x128xf32>
    %15 = arith.truncf %14 : vector<128x128xf32> to vector<128x128xbf16>
    %c0_10 = arith.constant 0 : index
    %c0_11 = arith.constant 0 : index
    %16 = vector.load %arg6[%c0_10, %c0_11] : memref<128x128xbf16, #tpu.memory_space<vmem>>, vector<128x128xbf16>
    %cst_12 = arith.constant dense<0.000000e+00> : vector<128x128xf32>
    %17 = tpu.matmul %15, %16, %cst_12 {dimension_numbers = #tpu.dot_dimension_numbers<[1], [0], [0], [1], [0, 0, 1, 1], [], []>} : vector<128x128xbf16>, vector<128x128xbf16>, vector<128x128xf32> -> vector<128x128xf32>
    %c0_13 = arith.constant 0 : index
    %c0_14 = arith.constant 0 : index
    %18 = vector.load %arg7[%c0_13, %c0_14] : memref<1x128xf32, #tpu.memory_space<vmem>>, vector<1x128xf32>
    %19 = vector.broadcast %18 : vector<1x128xf32> to vector<128x128xf32>
    %20 = arith.addf %17, %19 : vector<128x128xf32>
    %cst_15 = arith.constant 2.000000e-01 : f32
    %21 = vector.broadcast %cst_15 : f32 to vector<128x128xf32>
    %22 = arith.mulf %21, %20 : vector<128x128xf32>
    %23 = arith.maximumf %20, %22 : vector<128x128xf32>
    %c0_16 = arith.constant 0 : index
    %c0_17 = arith.constant 0 : index
    %24 = vector.load %arg8[%c0_16, %c0_17] : memref<1x128xf32, #tpu.memory_space<vmem>>, vector<1x128xf32>
    %25 = vector.broadcast %24 : vector<1x128xf32> to vector<128x128xf32>
    %26 = arith.mulf %23, %25 : vector<128x128xf32>
    %cst_18 = arith.constant dense<0.000000e+00> : vector<128xf32>
    %27 = vector.multi_reduction <add>, %26, %cst_18 [1] : vector<128x128xf32> to vector<128xf32>
    %c0_19 = arith.constant 0 : index
    %c0_20 = arith.constant 0 : index
    %28 = memref.load %arg9[%c0_19, %c0_20] : memref<1x1xf32, #tpu.memory_space<smem>>
    %29 = vector.broadcast %28 : f32 to vector<128xf32>
    %30 = arith.addf %27, %29 : vector<128xf32>
    %31 = arith.negf %30 : vector<128xf32>
    %32 = math.exp %31 : vector<128xf32>
    %cst_21 = arith.constant 1.000000e+00 : f32
    %33 = vector.broadcast %cst_21 : f32 to vector<128xf32>
    %34 = arith.addf %33, %32 : vector<128xf32>
    %35 = arith.divf %33, %34 : vector<128xf32>
    %36 = vector.shape_cast %35 : vector<128xf32> to vector<1x128xf32>
    %c0_22 = arith.constant 0 : index
    %c0_23 = arith.constant 0 : index
    %37 = vector.load %arg10[%c0_22, %c0_23] : memref<1x128xf32, #tpu.memory_space<vmem>>, vector<1x128xf32>
    tpu.vector_store %arg10[%c0_22, %c0_23], %36 {strides = array<i32>} : memref<1x128xf32, #tpu.memory_space<vmem>>, vector<1x128xf32>,
    return
  }
  func.func @transform_0(%arg0: i32) -> (i32, i32) {
    %c0_i32 = arith.constant 0 : i32
    %c0_i32_0 = arith.constant 0 : i32
    return %arg0, %c0_i32 : i32, i32
  }
  func.func @transform_1(%arg0: i32) -> (i32, i32) {
    %c0_i32 = arith.constant 0 : i32
    %c0_i32_0 = arith.constant 0 : i32
    return %arg0, %c0_i32 : i32, i32
  }
  func.func @transform_2(%arg0: i32) -> (i32, i32) {
    %c0_i32 = arith.constant 0 : i32
    %c0_i32_0 = arith.constant 0 : i32
    %c0_i32_1 = arith.constant 0 : i32
    return %c0_i32, %c0_i32_0 : i32, i32
  }
  func.func @transform_3(%arg0: i32) -> (i32, i32) {
    %c0_i32 = arith.constant 0 : i32
    %c0_i32_0 = arith.constant 0 : i32
    %c0_i32_1 = arith.constant 0 : i32
    return %c0_i32, %c0_i32_0 : i32, i32
  }
  func.func @transform_4(%arg0: i32) -> (i32, i32) {
    %c0_i32 = arith.constant 0 : i32
    %c0_i32_0 = arith.constant 0 : i32
    %c0_i32_1 = arith.constant 0 : i32
    return %c0_i32, %c0_i32_0 : i32, i32
  }
  func.func @transform_5(%arg0: i32) -> (i32, i32) {
    %c0_i32 = arith.constant 0 : i32
    %c0_i32_0 = arith.constant 0 : i32
    %c0_i32_1 = arith.constant 0 : i32
    return %c0_i32, %c0_i32_0 : i32, i32
  }
  func.func @transform_6(%arg0: i32) -> (i32, i32) {
    %c0_i32 = arith.constant 0 : i32
    %c0_i32_0 = arith.constant 0 : i32
    %c0_i32_1 = arith.constant 0 : i32
    return %c0_i32, %c0_i32_0 : i32, i32
  }
  func.func @transform_7(%arg0: i32) -> (i32, i32) {
    %c0_i32 = arith.constant 0 : i32
    %c0_i32_0 = arith.constant 0 : i32
    %c0_i32_1 = arith.constant 0 : i32
    return %c0_i32, %c0_i32_0 : i32, i32
  }
  func.func @transform_8(%arg0: i32) -> (i32, i32) {
    %c0_i32 = arith.constant 0 : i32
    %c0_i32_0 = arith.constant 0 : i32
    %c0_i32_1 = arith.constant 0 : i32
    return %c0_i32, %c0_i32_0 : i32, i32
  }
  func.func @transform_9(%arg0: i32) -> (i32, i32) {
    %c0_i32 = arith.constant 0 : i32
    %c0_i32_0 = arith.constant 0 : i32
    return %c0_i32, %arg0 : i32, i32
  }
}

</mosaic_0001>

<llo_original>
// kernel: tpu_custom_call.1
$region0: #{tpu_custom_call.1}
  #allocation0 [shape = 'u32[]', space=smem, size = 0x4, offset = 0x4, fixed_abs, tag = 'smem constant byte address 0x4 - core index']
  #allocation1 [shape = 'u32[144,128]{1,0:T(1,128)}', space=vmem, size = 0x12000, scoped, tag = 'internal scratch']
  #allocation2 [shape = 'f32[1,1]{1,0:T(1,128)S(6)}', space=smem, size = 0x200, scoped, tag = 'scoped memory for tpu_custom_call.1']
  %s0 = inlined_call_operand.vmem [shape: f32[128,1], index: 0, kind: input, shape index: {}]
  %s1 = inlined_call_operand.vmem [shape: f32[128,4], index: 1, kind: input, shape index: {}]
  %s2 = inlined_call_operand.vmem [shape: f32[1,128], index: 2, kind: input, shape index: {}]
  %s3 = inlined_call_operand.vmem [shape: f32[4,128], index: 3, kind: input, shape index: {}]
  %s4 = inlined_call_operand.vmem [shape: f32[1,128], index: 4, kind: input, shape index: {}]
  %s5 = inlined_call_operand.vmem [shape: bf16[128,128], index: 5, kind: input, shape index: {}]
  %s6 = inlined_call_operand.vmem [shape: f32[1,128], index: 6, kind: input, shape index: {}]
  %s7 = inlined_call_operand.vmem [shape: f32[1,128], index: 7, kind: input, shape index: {}]
  %s8 = inlined_call_operand.<no memory space> [shape: f32[1,1], index: 8, kind: input, shape index: {}]
  %s9 = inlined_call_operand.hbm [shape: f32[1,128], index: 9, kind: output, shape index: {}]
  %s10 = sld [smem:[#allocation0]]
  $region46: #{tpu_custom_call.1} parent=0
    _
  %s12 = ssub.s32 1, %s10
  %s13 = scalar_select 0, %s12, %s10
  %14 = sst [smem:[#allocation2]] %s8
  $region1: #{tpu_custom_call.1} parent=0
    #allocation3 [shape = 'u8[512]{0}', space=vmem, size = 0x400, scoped, tag = 'output window, operand 0, single buffered']
    #allocation4 [shape = 's32[1]{0}', space=sflag, size = 0x4, scoped, tag = 'scoped memory for tpu_custom_call.1']
    %15 = vsyncpa [#allocation4], 0
    // Predicated region
    $region2: #{tpu_custom_call.1} parent=1 // pred_check
      _
    $region3: #{tpu_custom_call.1} parent=1 // pred_check_branch
      %17 = sbr.rel (0) target = $region5
    $region4: #{tpu_custom_call.1} parent=1 // pred_region
      _
    $region5: #{tpu_custom_call.1} parent=1 // pred_fallthru
      _
    // Predicated region
    $region6: #{tpu_custom_call.1} parent=1 // pred_check
      _
    $region7: #{tpu_custom_call.1} parent=1 // pred_check_branch
      %19 = sbr.rel (0) target = $region9
    $region8: #{tpu_custom_call.1} parent=1 // pred_region
      _
    $region9: #{tpu_custom_call.1} parent=1 // pred_fallthru
      _
    // Predicated region
    $region10: #{tpu_custom_call.1} parent=1 // pred_check
      _
    $region11: #{tpu_custom_call.1} parent=1 // pred_check_branch
      %21 = sbr.rel (0) target = $region13
    $region12: #{tpu_custom_call.1} parent=1 // pred_region
      _
    $region13: #{tpu_custom_call.1} parent=1 // pred_fallthru
      _
    // Predicated region
    $region14: #{tpu_custom_call.1} parent=1 // pred_check
      _
    $region15: #{tpu_custom_call.1} parent=1 // pred_check_branch
      %23 = sbr.rel (0) target = $region17
    $region16: #{tpu_custom_call.1} parent=1 // pred_region
      _
    $region17: #{tpu_custom_call.1} parent=1 // pred_fallthru
      _
    // Predicated region
    $region18: #{tpu_custom_call.1} parent=1 // pred_check
      _
    $region19: #{tpu_custom_call.1} parent=1 // pred_check_branch
      %25 = sbr.rel (0) target = $region21
    $region20: #{tpu_custom_call.1} parent=1 // pred_region
      _
    $region21: #{tpu_custom_call.1} parent=1 // pred_fallthru
      _
    // Predicated region
    $region22: #{tpu_custom_call.1} parent=1 // pred_check
      _
    $region23: #{tpu_custom_call.1} parent=1 // pred_check_branch
      %27 = sbr.rel (0) target = $region25
    $region24: #{tpu_custom_call.1} parent=1 // pred_region
      _
    $region25: #{tpu_custom_call.1} parent=1 // pred_fallthru
      _
    // Predicated region
    $region26: #{tpu_custom_call.1} parent=1 // pred_check
      _
    $region27: #{tpu_custom_call.1} parent=1 // pred_check_branch
      %29 = sbr.rel (0) target = $region29
    $region28: #{tpu_custom_call.1} parent=1 // pred_region
      _
    $region29: #{tpu_custom_call.1} parent=1 // pred_fallthru
      _
    // Predicated region
    $region30: #{tpu_custom_call.1} parent=1 // pred_check
      _
    $region31: #{tpu_custom_call.1} parent=1 // pred_check_branch
      %31 = sbr.rel (0) target = $region33
    $region32: #{tpu_custom_call.1} parent=1 // pred_region
      _
    $region33: #{tpu_custom_call.1} parent=1 // pred_fallthru
      _
    // Predicated region
    $region34: #{tpu_custom_call.1} parent=1 // pred_check
      _
    $region35: #{tpu_custom_call.1} parent=1 // pred_check_branch
      %33 = sbr.rel (0) target = $region37
    $region36: #{tpu_custom_call.1} parent=1 // pred_region
      _
    $region37: #{tpu_custom_call.1} parent=1 // pred_fallthru
      _
    %v35 = vld [vmem:[%s1] sm:$0xff]
    %v36 = vld [vmem:[%s1 + $0x8] sm:$0xff]
    %v37 = vld [vmem:[%s1 + $0x10] sm:$0xff]
    %v38 = vld [vmem:[%s1 + $0x18] sm:$0xff]
    %v39 = vld [vmem:[%s1 + $0x20] sm:$0xff]
    %v40 = vld [vmem:[%s1 + $0x28] sm:$0xff]
    %v41 = vld [vmem:[%s1 + $0x30] sm:$0xff]
    %v42 = vld [vmem:[%s1 + $0x38] sm:$0xff]
    %v43 = vld [vmem:[%s1 + $0x40] sm:$0xff]
    %v44 = vld [vmem:[%s1 + $0x48] sm:$0xff]
    %v45 = vld [vmem:[%s1 + $0x50] sm:$0xff]
    %v46 = vld [vmem:[%s1 + $0x58] sm:$0xff]
    %v47 = vld [vmem:[%s1 + $0x60] sm:$0xff]
    %v48 = vld [vmem:[%s1 + $0x68] sm:$0xff]
    %v49 = vld [vmem:[%s1 + $0x70] sm:$0xff]
    %v50 = vld [vmem:[%s1 + $0x78] sm:$0xff]
    %v51 = vld [vmem:[%s3] sm:$0xf]
    %v52 = vld [vmem:[%s0] sm:$0xff]
    %v53 = vld [vmem:[%s0 + $0x8] sm:$0xff]
    %v54 = vld [vmem:[%s0 + $0x10] sm:$0xff]
    %v55 = vld [vmem:[%s0 + $0x18] sm:$0xff]
    %v56 = vld [vmem:[%s0 + $0x20] sm:$0xff]
    %v57 = vld [vmem:[%s0 + $0x28] sm:$0xff]
    %v58 = vld [vmem:[%s0 + $0x30] sm:$0xff]
    %v59 = vld [vmem:[%s0 + $0x38] sm:$0xff]
    %v60 = vld [vmem:[%s0 + $0x40] sm:$0xff]
    %v61 = vld [vmem:[%s0 + $0x48] sm:$0xff]
    %v62 = vld [vmem:[%s0 + $0x50] sm:$0xff]
    %v63 = vld [vmem:[%s0 + $0x58] sm:$0xff]
    %v64 = vld [vmem:[%s0 + $0x60] sm:$0xff]
    %v65 = vld [vmem:[%s0 + $0x68] sm:$0xff]
    %v66 = vld [vmem:[%s0 + $0x70] sm:$0xff]
    %v67 = vld [vmem:[%s0 + $0x78] sm:$0xff]
    %v68 = vld [vmem:[%s2] sm:$0x1]
    %70 = vset.pattern.permute.xlu0 0
    %71 = vperm.xlu0 %70, %v52
    %v72 = vpop.permute.xlu0 %71
    %75 = vset.pattern.permute.xlu0 0
    %76 = vperm.xlu0 %75, %v53
    %v77 = vpop.permute.xlu0 %76
    %80 = vset.pattern.permute.xlu0 0
    %81 = vperm.xlu0 %80, %v54
    %v82 = vpop.permute.xlu0 %81
    %85 = vset.pattern.permute.xlu0 0
    %86 = vperm.xlu0 %85, %v55
    %v87 = vpop.permute.xlu0 %86
    %90 = vset.pattern.permute.xlu0 0
    %91 = vperm.xlu0 %90, %v56
    %v92 = vpop.permute.xlu0 %91
    %95 = vset.pattern.permute.xlu0 0
    %96 = vperm.xlu0 %95, %v57
    %v97 = vpop.permute.xlu0 %96
    %100 = vset.pattern.permute.xlu0 0
    %101 = vperm.xlu0 %100, %v58
    %v102 = vpop.permute.xlu0 %101
    %105 = vset.pattern.permute.xlu0 0
    %106 = vperm.xlu0 %105, %v59
    %v107 = vpop.permute.xlu0 %106
    %110 = vset.pattern.permute.xlu0 0
    %111 = vperm.xlu0 %110, %v60
    %v112 = vpop.permute.xlu0 %111
    %115 = vset.pattern.permute.xlu0 0
    %116 = vperm.xlu0 %115, %v61
    %v117 = vpop.permute.xlu0 %116
    %120 = vset.pattern.permute.xlu0 0
    %121 = vperm.xlu0 %120, %v62
    %v122 = vpop.permute.xlu0 %121
    %125 = vset.pattern.permute.xlu0 0
    %126 = vperm.xlu0 %125, %v63
    %v127 = vpop.permute.xlu0 %126
    %130 = vset.pattern.permute.xlu0 0
    %131 = vperm.xlu0 %130, %v64
    %v132 = vpop.permute.xlu0 %131
    %135 = vset.pattern.permute.xlu0 0
    %136 = vperm.xlu0 %135, %v65
    %v137 = vpop.permute.xlu0 %136
    %140 = vset.pattern.permute.xlu0 0
    %141 = vperm.xlu0 %140, %v66
    %v142 = vpop.permute.xlu0 %141
    %145 = vset.pattern.permute.xlu0 0
    %146 = vperm.xlu0 %145, %v67
    %v147 = vpop.permute.xlu0 %146
    %v150 = vlaneseq
    %v151 = vshrl.u32 %v150, 7
    %v152 = vsub.s32 0, %v151
    %v153 = vrot.slane %v68, %v152
    %v155 = vmul.f32 %v72, %v153
    %v156 = vmul.f32 %v77, %v153
    %v157 = vmul.f32 %v82, %v153
    %v158 = vmul.f32 %v87, %v153
    %v159 = vmul.f32 %v92, %v153
    %v160 = vmul.f32 %v97, %v153
    %v161 = vmul.f32 %v102, %v153
    %v162 = vmul.f32 %v107, %v153
    %v163 = vmul.f32 %v112, %v153
    %v164 = vmul.f32 %v117, %v153
    %v165 = vmul.f32 %v122, %v153
    %v166 = vmul.f32 %v127, %v153
    %v167 = vmul.f32 %v132, %v153
    %v168 = vmul.f32 %v137, %v153
    %v169 = vmul.f32 %v142, %v153
    %v170 = vmul.f32 %v147, %v153
    %vm171 = vcmask 31744
    %v173 = vsel %vm171, %v35, 0
    %v176 = vsel %vm171, %v36, 0
    %v179 = vsel %vm171, %v37, 0
    %v182 = vsel %vm171, %v38, 0
    %v185 = vsel %vm171, %v39, 0
    %v188 = vsel %vm171, %v40, 0
    %v191 = vsel %vm171, %v41, 0
    %v194 = vsel %vm171, %v42, 0
    %v197 = vsel %vm171, %v43, 0
    %v200 = vsel %vm171, %v44, 0
    %v203 = vsel %vm171, %v45, 0
    %v206 = vsel %vm171, %v46, 0
    %v209 = vsel %vm171, %v47, 0
    %v212 = vsel %vm171, %v48, 0
    %v215 = vsel %vm171, %v49, 0
    %v218 = vsel %vm171, %v50, 0
    %vm220 = vcmask 1043456
    %v222 = vsel %vm220, %v51, 0
    %224 = vmatprep.subr.mxu0 0.0
    %225 = vmatpush1.msra.mxu0 %v222
    %226 = vmatprep.subr.mxu0 0.0
    %227 = vmatpush1.msra.mxu0 0.0
    %228 = vmatprep.subr.mxu0 0.0
    %229 = vmatpush1.msra.mxu0 0.0
    %230 = vmatprep.subr.mxu0 0.0
    %231 = vmatpush1.msra.mxu0 0.0
    %232 = vmatprep.subr.mxu0 0.0
    %233 = vmatpush1.msra.mxu0 0.0
    %234 = vmatprep.subr.mxu0 0.0
    %235 = vmatpush1.msra.mxu0 0.0
    %236 = vmatprep.subr.mxu0 0.0
    %237 = vmatpush1.msra.mxu0 0.0
    %238 = vmatprep.subr.mxu0 0.0
    %239 = vmatpush1.msra.mxu0 0.0
    %240 = vmatprep.subr.mxu0 0.0
    %241 = vmatpush1.msra.mxu0 0.0
    %242 = vmatprep.subr.mxu0 0.0
    %243 = vmatpush1.msra.mxu0 0.0
    %244 = vmatprep.subr.mxu0 0.0
    %245 = vmatpush1.msra.mxu0 0.0
    %246 = vmatprep.subr.mxu0 0.0
    %247 = vmatpush1.msra.mxu0 0.0
    %248 = vmatprep.subr.mxu0 0.0
    %249 = vmatpush1.msra.mxu0 0.0
    %250 = vmatprep.subr.mxu0 0.0
    %251 = vmatpush1.msra.mxu0 0.0
    %252 = vmatprep.subr.mxu0 0.0
    %253 = vmatpush1.msra.mxu0 0.0
    %254 = vmatprep.subr.mxu0 0.0
    %255 = vmatpush1.msra.mxu0 0.0
    %256 = vmatprep.subr.mxu0 0.0
    %257 = vmatpush1.msra.mxu0 0.0
    %258 = vmatprep.subr.mxu0 0.0
    %259 = vmatpush1.msra.mxu0 0.0
    %260 = vmatprep.subr.mxu0 0.0
    %261 = vmatpush1.msra.mxu0 0.0
    %262 = vmatprep.subr.mxu0 0.0
    %263 = vmatpush1.msra.mxu0 0.0
    %264 = vmatprep.subr.mxu0 0.0
    %265 = vmatpush1.msra.mxu0 0.0
    %266 = vmatprep.subr.mxu0 0.0
    %267 = vmatpush1.msra.mxu0 0.0
    %268 = vmatprep.subr.mxu0 0.0
    %269 = vmatpush1.msra.mxu0 0.0
    %270 = vmatprep.subr.mxu0 0.0
    %271 = vmatpush1.msra.mxu0 0.0
    %272 = vmatprep.subr.mxu0 0.0
    %273 = vmatpush1.msra.mxu0 0.0
    %274 = vmatprep.subr.mxu0 0.0
    %275 = vmatpush1.msra.mxu0 0.0
    %276 = vmatprep.subr.mxu0 0.0
    %277 = vmatpush1.msra.mxu0 0.0
    %278 = vmatprep.subr.mxu0 0.0
    %279 = vmatpush1.msra.mxu0 0.0
    %280 = vmatprep.subr.mxu0 0.0
    %281 = vmatpush1.msra.mxu0 0.0
    %282 = vmatprep.subr.mxu0 0.0
    %283 = vmatpush1.msra.mxu0 0.0
    %284 = vmatprep.subr.mxu0 0.0
    %285 = vmatpush1.msra.mxu0 0.0
    %286 = vmatprep.subr.mxu0 0.0
    %287 = vmatpush1.msra.mxu0 0.0
    %288 = vmatprep.mubr.f32.mxu0 0.0
    %289 = vmatmul.mubr.f32.gmra.mrb[0].mxu0 %v173
    %v290 = vpop.f32.mrb[0].mxu0
    %v291 = vadd.f32 %v155, %v290
    %v292 = vpop.f32.mrb[0].mxu0
    %293 = vmatprep.mubr.f32.mxu0 0.0
    %294 = vmatmul.mubr.f32.gmra.mrb[0].mxu0 %v176
    %v295 = vpop.f32.mrb[0].mxu0
    %v296 = vadd.f32 %v156, %v295
    %v297 = vpop.f32.mrb[0].mxu0
    %298 = vmatprep.mubr.f32.mxu0 0.0
    %299 = vmatmul.mubr.f32.gmra.mrb[0].mxu0 %v179
    %v300 = vpop.f32.mrb[0].mxu0
    %v301 = vadd.f32 %v157, %v300
    %v302 = vpop.f32.mrb[0].mxu0
    %303 = vmatprep.mubr.f32.mxu0 0.0
    %304 = vmatmul.mubr.f32.gmra.mrb[0].mxu0 %v182
    %v305 = vpop.f32.mrb[0].mxu0
    %v306 = vadd.f32 %v158, %v305
    %v307 = vpop.f32.mrb[0].mxu0
    %308 = vmatprep.mubr.f32.mxu0 0.0
    %309 = vmatmul.mubr.f32.gmra.mrb[0].mxu0 %v185
    %v310 = vpop.f32.mrb[0].mxu0
    %v311 = vadd.f32 %v159, %v310
    %v312 = vpop.f32.mrb[0].mxu0
    %313 = vmatprep.mubr.f32.mxu0 0.0
    %314 = vmatmul.mubr.f32.gmra.mrb[0].mxu0 %v188
    %v315 = vpop.f32.mrb[0].mxu0
    %v316 = vadd.f32 %v160, %v315
    %v317 = vpop.f32.mrb[0].mxu0
    %318 = vmatprep.mubr.f32.mxu0 0.0
    %319 = vmatmul.mubr.f32.gmra.mrb[0].mxu0 %v191
    %v320 = vpop.f32.mrb[0].mxu0
    %v321 = vadd.f32 %v161, %v320
    %v322 = vpop.f32.mrb[0].mxu0
    %323 = vmatprep.mubr.f32.mxu0 0.0
    %324 = vmatmul.mubr.f32.gmra.mrb[0].mxu0 %v194
    %v325 = vpop.f32.mrb[0].mxu0
    %v326 = vadd.f32 %v162, %v325
    %v327 = vpop.f32.mrb[0].mxu0
    %328 = vmatprep.mubr.f32.mxu0 0.0
    %329 = vmatmul.mubr.f32.gmra.mrb[0].mxu0 %v197
    %v330 = vpop.f32.mrb[0].mxu0
    %v331 = vadd.f32 %v163, %v330
    %v332 = vpop.f32.mrb[0].mxu0
    %333 = vmatprep.mubr.f32.mxu0 0.0
    %334 = vmatmul.mubr.f32.gmra.mrb[0].mxu0 %v200
    %v335 = vpop.f32.mrb[0].mxu0
    %v336 = vadd.f32 %v164, %v335
    %v337 = vpop.f32.mrb[0].mxu0
    %338 = vmatprep.mubr.f32.mxu0 0.0
    %339 = vmatmul.mubr.f32.gmra.mrb[0].mxu0 %v203
    %v340 = vpop.f32.mrb[0].mxu0
    %v341 = vadd.f32 %v165, %v340
    %v342 = vpop.f32.mrb[0].mxu0
    %343 = vmatprep.mubr.f32.mxu0 0.0
    %344 = vmatmul.mubr.f32.gmra.mrb[0].mxu0 %v206
    %v345 = vpop.f32.mrb[0].mxu0
    %v346 = vadd.f32 %v166, %v345
    %v347 = vpop.f32.mrb[0].mxu0
    %348 = vmatprep.mubr.f32.mxu0 0.0
    %349 = vmatmul.mubr.f32.gmra.mrb[0].mxu0 %v209
    %v350 = vpop.f32.mrb[0].mxu0
    %v351 = vadd.f32 %v167, %v350
    %v352 = vpop.f32.mrb[0].mxu0
    %353 = vmatprep.mubr.f32.mxu0 0.0
    %354 = vmatmul.mubr.f32.gmra.mrb[0].mxu0 %v212
    %v355 = vpop.f32.mrb[0].mxu0
    %v356 = vadd.f32 %v168, %v355
    %v357 = vpop.f32.mrb[0].mxu0
    %358 = vmatprep.mubr.f32.mxu0 0.0
    %359 = vmatmul.mubr.f32.gmra.mrb[0].mxu0 %v215
    %v360 = vpop.f32.mrb[0].mxu0
    %v361 = vadd.f32 %v169, %v360
    %v362 = vpop.f32.mrb[0].mxu0
    %363 = vmatprep.mubr.f32.mxu0 0.0
    %364 = vmatmul.mubr.f32.gmra.mrb[0].mxu0 %v218
    %v365 = vpop.f32.mrb[0].mxu0
    %v366 = vadd.f32 %v170, %v365
    %v367 = vpop.f32.mrb[0].mxu0
    %368 = vdwg.mxu0
    %v369 = vld [vmem:[%s4] sm:$0x1]
    %v371 = vlaneseq
    %v372 = vshrl.u32 %v371, 7
    %v373 = vsub.s32 0, %v372
    %v374 = vrot.slane %v369, %v373
    %v376 = vadd.f32 %v291, %v374
    %v377 = vadd.f32 %v296, %v374
    %v378 = vadd.f32 %v301, %v374
    %v379 = vadd.f32 %v306, %v374
    %v380 = vadd.f32 %v311, %v374
    %v381 = vadd.f32 %v316, %v374
    %v382 = vadd.f32 %v321, %v374
    %v383 = vadd.f32 %v326, %v374
    %v384 = vadd.f32 %v331, %v374
    %v385 = vadd.f32 %v336, %v374
    %v386 = vadd.f32 %v341, %v374
    %v387 = vadd.f32 %v346, %v374
    %v388 = vadd.f32 %v351, %v374
    %v389 = vadd.f32 %v356, %v374
    %v390 = vadd.f32 %v361, %v374
    %v391 = vadd.f32 %v366, %v374
    %v392 = vmul.f32 %v376, 0.2
    %v393 = vmul.f32 %v377, 0.2
    %v394 = vmul.f32 %v378, 0.2
    %v395 = vmul.f32 %v379, 0.2
    %v396 = vmul.f32 %v380, 0.2
    %v397 = vmul.f32 %v381, 0.2
    %v398 = vmul.f32 %v382, 0.2
    %v399 = vmul.f32 %v383, 0.2
    %v400 = vmul.f32 %v384, 0.2
    %v401 = vmul.f32 %v385, 0.2
    %v402 = vmul.f32 %v386, 0.2
    %v403 = vmul.f32 %v387, 0.2
    %v404 = vmul.f32 %v388, 0.2
    %v405 = vmul.f32 %v389, 0.2
    %v406 = vmul.f32 %v390, 0.2
    %v407 = vmul.f32 %v391, 0.2
    %v408 = vmax.f32 %v376, %v392
    %v409 = vmax.f32 %v377, %v393
    %v410 = vmax.f32 %v378, %v394
    %v411 = vmax.f32 %v379, %v395
    %v412 = vmax.f32 %v380, %v396
    %v413 = vmax.f32 %v381, %v397
    %v414 = vmax.f32 %v382, %v398
    %v415 = vmax.f32 %v383, %v399
    %v416 = vmax.f32 %v384, %v400
    %v417 = vmax.f32 %v385, %v401
    %v418 = vmax.f32 %v386, %v402
    %v419 = vmax.f32 %v387, %v403
    %v420 = vmax.f32 %v388, %v404
    %v421 = vmax.f32 %v389, %v405
    %v422 = vmax.f32 %v390, %v406
    %v423 = vmax.f32 %v391, %v407
    %v424 = vpack.c.bf16 %v409, %v408
    %v425 = vpack.c.bf16 %v411, %v410
    %v426 = vpack.c.bf16 %v413, %v412
    %v427 = vpack.c.bf16 %v415, %v414
    %v428 = vpack.c.bf16 %v417, %v416
    %v429 = vpack.c.bf16 %v419, %v418
    %v430 = vpack.c.bf16 %v421, %v420
    %v431 = vpack.c.bf16 %v423, %v422
    %v432 = vld [vmem:[%s5] sm:$0xf]
    %v433 = vld [vmem:[%s5 + $0x4] sm:$0xf]
    %v434 = vld [vmem:[%s5 + $0x8] sm:$0xf]
    %v435 = vld [vmem:[%s5 + $0xc] sm:$0xf]
    %v436 = vld [vmem:[%s5 + $0x10] sm:$0xf]
    %v437 = vld [vmem:[%s5 + $0x14] sm:$0xf]
    %v438 = vld [vmem:[%s5 + $0x18] sm:$0xf]
    %v439 = vld [vmem:[%s5 + $0x1c] sm:$0xf]
    %v440 = vld [vmem:[%s5 + $0x20] sm:$0xf]
    %v441 = vld [vmem:[%s5 + $0x24] sm:$0xf]
    %v442 = vld [vmem:[%s5 + $0x28] sm:$0xf]
    %v443 = vld [vmem:[%s5 + $0x2c] sm:$0xf]
    %v444 = vld [vmem:[%s5 + $0x30] sm:$0xf]
    %v445 = vld [vmem:[%s5 + $0x34] sm:$0xf]
    %v446 = vld [vmem:[%s5 + $0x38] sm:$0xf]
    %v447 = vld [vmem:[%s5 + $0x3c] sm:$0xf]
    %v448 = vld [vmem:[%s6] sm:$0x1]
    %v450 = vlaneseq
    %v451 = vshrl.u32 %v450, 7
    %v452 = vsub.s32 0, %v451
    %v453 = vrot.slane %v448, %v452
    %v471 = vunpack.c.l.b16 %v432
    %v472 = vunpack.c.l.b16 %v433
    %v473 = vunpack.c.l.b16 %v434
    %v474 = vunpack.c.l.b16 %v435
    %v475 = vunpack.c.l.b16 %v436
    %v476 = vunpack.c.l.b16 %v437
    %v477 = vunpack.c.l.b16 %v438
    %v478 = vunpack.c.l.b16 %v439
    %v479 = vunpack.c.l.b16 %v440
    %v480 = vunpack.c.l.b16 %v441
    %v481 = vunpack.c.l.b16 %v442
    %v482 = vunpack.c.l.b16 %v443
    %v483 = vunpack.c.l.b16 %v444
    %v484 = vunpack.c.l.b16 %v445
    %v485 = vunpack.c.l.b16 %v446
    %v486 = vunpack.c.l.b16 %v447
    %v487 = vpack.c.b16 %v472, %v471
    %v488 = vpack.c.b16 %v474, %v473
    %v489 = vpack.c.b16 %v476, %v475
    %v490 = vpack.c.b16 %v478, %v477
    %v491 = vpack.c.b16 %v480, %v479
    %v492 = vpack.c.b16 %v482, %v481
    %v493 = vpack.c.b16 %v484, %v483
    %v494 = vpack.c.b16 %v486, %v485
    %503 = vmatprep.subr.bf16.mxu0 0
    %504 = vmatpush1.bf16.msra.mxu0 %v487
    %505 = vmatprep.subr.bf16.mxu0 0
    %506 = vmatpush1.bf16.msra.mxu0 %v488
    %507 = vmatprep.subr.bf16.mxu0 0
    %508 = vmatpush1.bf16.msra.mxu0 %v489
    %509 = vmatprep.subr.bf16.mxu0 0
    %510 = vmatpush1.bf16.msra.mxu0 %v490
    %511 = vmatprep.subr.bf16.mxu0 0
    %512 = vmatpush1.bf16.msra.mxu0 %v491
    %513 = vmatprep.subr.bf16.mxu0 0
    %514 = vmatpush1.bf16.msra.mxu0 %v492
    %515 = vmatprep.subr.bf16.mxu0 0
    %516 = vmatpush1.bf16.msra.mxu0 %v493
    %517 = vmatprep.subr.bf16.mxu0 0
    %518 = vmatpush1.bf16.msra.mxu0 %v494
    %519 = vmatprep.subr.bf16.mxu0 0
    %520 = vmatpush1.bf16.msra.mxu0 0
    %521 = vmatprep.subr.bf16.mxu0 0
    %522 = vmatpush1.bf16.msra.mxu0 0
    %523 = vmatprep.subr.bf16.mxu0 0
    %524 = vmatpush1.bf16.msra.mxu0 0
    %525 = vmatprep.subr.bf16.mxu0 0
    %526 = vmatpush1.bf16.msra.mxu0 0
    %527 = vmatprep.subr.bf16.mxu0 0
    %528 = vmatpush1.bf16.msra.mxu0 0
    %529 = vmatprep.subr.bf16.mxu0 0
    %530 = vmatpush1.bf16.msra.mxu0 0
    %531 = vmatprep.subr.bf16.mxu0 0
    %532 = vmatpush1.bf16.msra.mxu0 0
    %533 = vmatprep.subr.bf16.mxu0 0
    %534 = vmatpush1.bf16.msra.mxu0 0
    %535 = vmatprep.mubr.bf16.mxu0 0
    %536 = vmatmul.mubr.bf16.gmra.mrb[0].mxu0 %v424
    %v537 = vpop.f32.mrb[0].mxu0
    %v538 = vadd.f32 %v453, %v537
    %v539 = vpop.f32.mrb[0].mxu0
    %v540 = vpop.f32.mrb[0].mxu0
    %v541 = vadd.f32 %v453, %v540
    %v542 = vpop.f32.mrb[0].mxu0
    %543 = vmatprep.mubr.bf16.mxu0 0
    %544 = vmatmul.mubr.bf16.gmra.mrb[0].mxu0 %v425
    %v545 = vpop.f32.mrb[0].mxu0
    %v546 = vadd.f32 %v453, %v545
    %v547 = vpop.f32.mrb[0].mxu0
    %v548 = vpop.f32.mrb[0].mxu0
    %v549 = vadd.f32 %v453, %v548
    %v550 = vpop.f32.mrb[0].mxu0
    %551 = vmatprep.mubr.bf16.mxu0 0
    %552 = vmatmul.mubr.bf16.gmra.mrb[0].mxu0 %v426
    %v553 = vpop.f32.mrb[0].mxu0
    %v554 = vadd.f32 %v453, %v553
    %v555 = vpop.f32.mrb[0].mxu0
    %v556 = vpop.f32.mrb[0].mxu0
    %v557 = vadd.f32 %v453, %v556
    %v558 = vpop.f32.mrb[0].mxu0
    %559 = vmatprep.mubr.bf16.mxu0 0
    %560 = vmatmul.mubr.bf16.gmra.mrb[0].mxu0 %v427
    %v561 = vpop.f32.mrb[0].mxu0
    %v562 = vadd.f32 %v453, %v561
    %v563 = vpop.f32.mrb[0].mxu0
    %v564 = vpop.f32.mrb[0].mxu0
    %v565 = vadd.f32 %v453, %v564
    %v566 = vpop.f32.mrb[0].mxu0
    %567 = vmatprep.mubr.bf16.mxu0 0
    %568 = vmatmul.mubr.bf16.gmra.mrb[0].mxu0 %v428
    %v569 = vpop.f32.mrb[0].mxu0
    %v570 = vadd.f32 %v453, %v569
    %v571 = vpop.f32.mrb[0].mxu0
    %v572 = vpop.f32.mrb[0].mxu0
    %v573 = vadd.f32 %v453, %v572
    %v574 = vpop.f32.mrb[0].mxu0
    %575 = vmatprep.mubr.bf16.mxu0 0
    %576 = vmatmul.mubr.bf16.gmra.mrb[0].mxu0 %v429
    %v577 = vpop.f32.mrb[0].mxu0
    %v578 = vadd.f32 %v453, %v577
    %v579 = vpop.f32.mrb[0].mxu0
    %v580 = vpop.f32.mrb[0].mxu0
    %v581 = vadd.f32 %v453, %v580
    %v582 = vpop.f32.mrb[0].mxu0
    %583 = vmatprep.mubr.bf16.mxu0 0
    %584 = vmatmul.mubr.bf16.gmra.mrb[0].mxu0 %v430
    %v585 = vpop.f32.mrb[0].mxu0
    %v586 = vadd.f32 %v453, %v585
    %v587 = vpop.f32.mrb[0].mxu0
    %v588 = vpop.f32.mrb[0].mxu0
    %v589 = vadd.f32 %v453, %v588
    %v590 = vpop.f32.mrb[0].mxu0
    %591 = vmatprep.mubr.bf16.mxu0 0
    %592 = vmatmul.mubr.bf16.gmra.mrb[0].mxu0 %v431
    %v593 = vpop.f32.mrb[0].mxu0
    %v594 = vadd.f32 %v453, %v593
    %v595 = vpop.f32.mrb[0].mxu0
    %v596 = vpop.f32.mrb[0].mxu0
    %v597 = vadd.f32 %v453, %v596
    %v598 = vpop.f32.mrb[0].mxu0
    %599 = vdwg.mxu0
    %v600 = vmul.f32 %v538, 0.2
    %v601 = vmul.f32 %v541, 0.2
    %v602 = vmul.f32 %v546, 0.2
    %v603 = vmul.f32 %v549, 0.2
    %v604 = vmul.f32 %v554, 0.2
    %v605 = vmul.f32 %v557, 0.2
    %v606 = vmul.f32 %v562, 0.2
    %v607 = vmul.f32 %v565, 0.2
    %v608 = vmul.f32 %v570, 0.2
    %v609 = vmul.f32 %v573, 0.2
    %v610 = vmul.f32 %v578, 0.2
    %v611 = vmul.f32 %v581, 0.2
    %v612 = vmul.f32 %v586, 0.2
    %v613 = vmul.f32 %v589, 0.2
    %v614 = vmul.f32 %v594, 0.2
    %v615 = vmul.f32 %v597, 0.2
    %v616 = vmax.f32 %v538, %v600
    %v617 = vmax.f32 %v541, %v601
    %v618 = vmax.f32 %v546, %v602
    %v619 = vmax.f32 %v549, %v603
    %v620 = vmax.f32 %v554, %v604
    %v621 = vmax.f32 %v557, %v605
    %v622 = vmax.f32 %v562, %v606
    %v623 = vmax.f32 %v565, %v607
    %v624 = vmax.f32 %v570, %v608
    %v625 = vmax.f32 %v573, %v609
    %v626 = vmax.f32 %v578, %v610
    %v627 = vmax.f32 %v581, %v611
    %v628 = vmax.f32 %v586, %v612
    %v629 = vmax.f32 %v589, %v613
    %v630 = vmax.f32 %v594, %v614
    %v631 = vmax.f32 %v597, %v615
    %v632 = vld [vmem:[%s7] sm:$0x1]
    %v634 = vlaneseq
    %v635 = vshrl.u32 %v634, 7
    %v636 = vsub.s32 0, %v635
    %v637 = vrot.slane %v632, %v636
    %v639 = vmul.f32 %v616, %v637
    %v640 = vmul.f32 %v617, %v637
    %v641 = vmul.f32 %v618, %v637
    %v642 = vmul.f32 %v619, %v637
    %v643 = vmul.f32 %v620, %v637
    %v644 = vmul.f32 %v621, %v637
    %v645 = vmul.f32 %v622, %v637
    %v646 = vmul.f32 %v623, %v637
    %v647 = vmul.f32 %v624, %v637
    %v648 = vmul.f32 %v625, %v637
    %v649 = vmul.f32 %v626, %v637
    %v650 = vmul.f32 %v627, %v637
    %v651 = vmul.f32 %v628, %v637
    %v652 = vmul.f32 %v629, %v637
    %v653 = vmul.f32 %v630, %v637
    %v654 = vmul.f32 %v631, %v637
    %655 = vadd.xlane.f32.xlu0 %v639
    %v656 = vpop.xlane.xlu0 %655
    %657 = vadd.xlane.f32.xlu0 %v640
    %v658 = vpop.xlane.xlu0 %657
    %659 = vadd.xlane.f32.xlu0 %v641
    %v660 = vpop.xlane.xlu0 %659
    %661 = vadd.xlane.f32.xlu0 %v642
    %v662 = vpop.xlane.xlu0 %661
    %663 = vadd.xlane.f32.xlu0 %v643
    %v664 = vpop.xlane.xlu0 %663
    %665 = vadd.xlane.f32.xlu0 %v644
    %v666 = vpop.xlane.xlu0 %665
    %667 = vadd.xlane.f32.xlu0 %v645
    %v668 = vpop.xlane.xlu0 %667
    %669 = vadd.xlane.f32.xlu0 %v646
    %v670 = vpop.xlane.xlu0 %669
    %671 = vadd.xlane.f32.xlu0 %v647
    %v672 = vpop.xlane.xlu0 %671
    %673 = vadd.xlane.f32.xlu0 %v648
    %v674 = vpop.xlane.xlu0 %673
    %675 = vadd.xlane.f32.xlu0 %v649
    %v676 = vpop.xlane.xlu0 %675
    %677 = vadd.xlane.f32.xlu0 %v650
    %v678 = vpop.xlane.xlu0 %677
    %679 = vadd.xlane.f32.xlu0 %v651
    %v680 = vpop.xlane.xlu0 %679
    %681 = vadd.xlane.f32.xlu0 %v652
    %v682 = vpop.xlane.xlu0 %681
    %683 = vadd.xlane.f32.xlu0 %v653
    %v684 = vpop.xlane.xlu0 %683
    %685 = vadd.xlane.f32.xlu0 %v654
    %v686 = vpop.xlane.xlu0 %685
    %s687 = sld [smem:[#allocation2]]
    %v688 = vstv %s687
    %v689 = vadd.f32 %v656, %v688
    %v690 = vadd.f32 %v658, %v688
    %v691 = vadd.f32 %v660, %v688
    %v692 = vadd.f32 %v662, %v688
    %v693 = vadd.f32 %v664, %v688
    %v694 = vadd.f32 %v666, %v688
    %v695 = vadd.f32 %v668, %v688
    %v696 = vadd.f32 %v670, %v688
    %v697 = vadd.f32 %v672, %v688
    %v698 = vadd.f32 %v674, %v688
    %v699 = vadd.f32 %v676, %v688
    %v700 = vadd.f32 %v678, %v688
    %v701 = vadd.f32 %v680, %v688
    %v702 = vadd.f32 %v682, %v688
    %v703 = vadd.f32 %v684, %v688
    %v704 = vadd.f32 %v686, %v688
    %v705 = vxor.u32 %v689, 2147483648
    %v706 = vxor.u32 %v690, 2147483648
    %v707 = vxor.u32 %v691, 2147483648
    %v708 = vxor.u32 %v692, 2147483648
    %v709 = vxor.u32 %v693, 2147483648
    %v710 = vxor.u32 %v694, 2147483648
    %v711 = vxor.u32 %v695, 2147483648
    %v712 = vxor.u32 %v696, 2147483648
    %v713 = vxor.u32 %v697, 2147483648
    %v714 = vxor.u32 %v698, 2147483648
    %v715 = vxor.u32 %v699, 2147483648
    %v716 = vxor.u32 %v700, 2147483648
    %v717 = vxor.u32 %v701, 2147483648
    %v718 = vxor.u32 %v702, 2147483648
    %v719 = vxor.u32 %v703, 2147483648
    %v720 = vxor.u32 %v704, 2147483648
    %v721 = vmul.f32 %v705, 1.442695
    %v722 = vpow.pop %v721
    %v723 = vmul.f32 %v706, 1.442695
    %v724 = vpow.pop %v723
    %v725 = vmul.f32 %v707, 1.442695
    %v726 = vpow.pop %v725
    %v727 = vmul.f32 %v708, 1.442695
    %v728 = vpow.pop %v727
    %v729 = vmul.f32 %v709, 1.442695
    %v730 = vpow.pop %v729
    %v731 = vmul.f32 %v710, 1.442695
    %v732 = vpow.pop %v731
    %v733 = vmul.f32 %v711, 1.442695
    %v734 = vpow.pop %v733
    %v735 = vmul.f32 %v712, 1.442695
    %v736 = vpow.pop %v735
    %v737 = vmul.f32 %v713, 1.442695
    %v738 = vpow.pop %v737
    %v739 = vmul.f32 %v714, 1.442695
    %v740 = vpow.pop %v739
    %v741 = vmul.f32 %v715, 1.442695
    %v742 = vpow.pop %v741
    %v743 = vmul.f32 %v716, 1.442695
    %v744 = vpow.pop %v743
    %v745 = vmul.f32 %v717, 1.442695
    %v746 = vpow.pop %v745
    %v747 = vmul.f32 %v718, 1.442695
    %v748 = vpow.pop %v747
    %v749 = vmul.f32 %v719, 1.442695
    %v750 = vpow.pop %v749
    %v751 = vmul.f32 %v720, 1.442695
    %v752 = vpow.pop %v751
    %v753 = vadd.f32 %v722, 1.0
    %v754 = vadd.f32 %v724, 1.0
    %v755 = vadd.f32 %v726, 1.0
    %v756 = vadd.f32 %v728, 1.0
    %v757 = vadd.f32 %v730, 1.0
    %v758 = vadd.f32 %v732, 1.0
    %v759 = vadd.f32 %v734, 1.0
    %v760 = vadd.f32 %v736, 1.0
    %v761 = vadd.f32 %v738, 1.0
    %v762 = vadd.f32 %v740, 1.0
    %v763 = vadd.f32 %v742, 1.0
    %v764 = vadd.f32 %v744, 1.0
    %v765 = vadd.f32 %v746, 1.0
    %v766 = vadd.f32 %v748, 1.0
    %v767 = vadd.f32 %v750, 1.0
    %v768 = vadd.f32 %v752, 1.0
    %v769 = vrcp.pop %v753
    %v770 = vmul.f32 1.0, %v769
    %v771 = vrcp.pop %v754
    %v772 = vmul.f32 1.0, %v771
    %v773 = vrcp.pop %v755
    %v774 = vmul.f32 1.0, %v773
    %v775 = vrcp.pop %v756
    %v776 = vmul.f32 1.0, %v775
    %v777 = vrcp.pop %v757
    %v778 = vmul.f32 1.0, %v777
    %v779 = vrcp.pop %v758
    %v780 = vmul.f32 1.0, %v779
    %v781 = vrcp.pop %v759
    %v782 = vmul.f32 1.0, %v781
    %v783 = vrcp.pop %v760
    %v784 = vmul.f32 1.0, %v783
    %v785 = vrcp.pop %v761
    %v786 = vmul.f32 1.0, %v785
    %v787 = vrcp.pop %v762
    %v788 = vmul.f32 1.0, %v787
    %v789 = vrcp.pop %v763
    %v790 = vmul.f32 1.0, %v789
    %v791 = vrcp.pop %v764
    %v792 = vmul.f32 1.0, %v791
    %v793 = vrcp.pop %v765
    %v794 = vmul.f32 1.0, %v793
    %v795 = vrcp.pop %v766
    %v796 = vmul.f32 1.0, %v795
    %v797 = vrcp.pop %v767
    %v798 = vmul.f32 1.0, %v797
    %v799 = vrcp.pop %v768
    %v800 = vmul.f32 1.0, %v799
    %v817 = vlaneseq
    %v818 = vand.u32 %v817, 127
    %v819 = vlaneseq
    %v820 = vshrl.u32 %v819, 7
    %v821 = vsub.s32 %v818, %v820
    %v822 = vrot.slane %v770, %v821
    %v823 = vadd.s32 %v818, 4294967288
    %v824 = vlaneseq
    %v825 = vshrl.u32 %v824, 7
    %v826 = vsub.s32 %v823, %v825
    %v827 = vrot.slane %v772, %v826
    %vm828 = vcmask 130112
    %v829 = vsel %vm828, %v827, %v822
    %v830 = vadd.s32 %v818, 4294967280
    %v831 = vlaneseq
    %v832 = vshrl.u32 %v831, 7
    %v833 = vsub.s32 %v830, %v832
    %v834 = vrot.slane %v774, %v833
    %vm835 = vcmask 195712
    %v836 = vsel %vm835, %v834, %v829
    %v837 = vadd.s32 %v818, 4294967272
    %v838 = vlaneseq
    %v839 = vshrl.u32 %v838, 7
    %v840 = vsub.s32 %v837, %v839
    %v841 = vrot.slane %v776, %v840
    %vm842 = vcmask 261312
    %v843 = vsel %vm842, %v841, %v836
    %v844 = vadd.s32 %v818, 4294967264
    %v845 = vlaneseq
    %v846 = vshrl.u32 %v845, 7
    %v847 = vsub.s32 %v844, %v846
    %v848 = vrot.slane %v778, %v847
    %vm849 = vcmask 326912
    %v850 = vsel %vm849, %v848, %v843
    %v851 = vadd.s32 %v818, 4294967256
    %v852 = vlaneseq
    %v853 = vshrl.u32 %v852, 7
    %v854 = vsub.s32 %v851, %v853
    %v855 = vrot.slane %v780, %v854
    %vm856 = vcmask 392512
    %v857 = vsel %vm856, %v855, %v850
    %v858 = vadd.s32 %v818, 4294967248
    %v859 = vlaneseq
    %v860 = vshrl.u32 %v859, 7
    %v861 = vsub.s32 %v858, %v860
    %v862 = vrot.slane %v782, %v861
    %vm863 = vcmask 458112
    %v864 = vsel %vm863, %v862, %v857
    %v865 = vadd.s32 %v818, 4294967240
    %v866 = vlaneseq
    %v867 = vshrl.u32 %v866, 7
    %v868 = vsub.s32 %v865, %v867
    %v869 = vrot.slane %v784, %v868
    %vm870 = vcmask 523712
    %v871 = vsel %vm870, %v869, %v864
    %v872 = vadd.s32 %v818, 4294967232
    %v873 = vlaneseq
    %v874 = vshrl.u32 %v873, 7
    %v875 = vsub.s32 %v872, %v874
    %v876 = vrot.slane %v786, %v875
    %vm877 = vcmask 589312
    %v878 = vsel %vm877, %v876, %v871
    %v879 = vadd.s32 %v818, 4294967224
    %v880 = vlaneseq
    %v881 = vshrl.u32 %v880, 7
    %v882 = vsub.s32 %v879, %v881
    %v883 = vrot.slane %v788, %v882
    %vm884 = vcmask 654912
    %v885 = vsel %vm884, %v883, %v878
    %v886 = vadd.s32 %v818, 4294967216
    %v887 = vlaneseq
    %v888 = vshrl.u32 %v887, 7
    %v889 = vsub.s32 %v886, %v888
    %v890 = vrot.slane %v790, %v889
    %vm891 = vcmask 720512
    %v892 = vsel %vm891, %v890, %v885
    %v893 = vadd.s32 %v818, 4294967208
    %v894 = vlaneseq
    %v895 = vshrl.u32 %v894, 7
    %v896 = vsub.s32 %v893, %v895
    %v897 = vrot.slane %v792, %v896
    %vm898 = vcmask 786112
    %v899 = vsel %vm898, %v897, %v892
    %v900 = vadd.s32 %v818, 4294967200
    %v901 = vlaneseq
    %v902 = vshrl.u32 %v901, 7
    %v903 = vsub.s32 %v900, %v902
    %v904 = vrot.slane %v794, %v903
    %vm905 = vcmask 851712
    %v906 = vsel %vm905, %v904, %v899
    %v907 = vadd.s32 %v818, 4294967192
    %v908 = vlaneseq
    %v909 = vshrl.u32 %v908, 7
    %v910 = vsub.s32 %v907, %v909
    %v911 = vrot.slane %v796, %v910
    %vm912 = vcmask 917312
    %v913 = vsel %vm912, %v911, %v906
    %v914 = vadd.s32 %v818, 4294967184
    %v915 = vlaneseq
    %v916 = vshrl.u32 %v915, 7
    %v917 = vsub.s32 %v914, %v916
    %v918 = vrot.slane %v798, %v917
    %vm919 = vcmask 982912
    %v920 = vsel %vm919, %v918, %v913
    %v921 = vadd.s32 %v818, 4294967176
    %v922 = vlaneseq
    %v923 = vshrl.u32 %v922, 7
    %v924 = vsub.s32 %v921, %v923
    %v925 = vrot.slane %v800, %v924
    %vm926 = vcmask 1048512
    %v927 = vsel %vm926, %v925, %v920
    %929 = vst [vmem:[#allocation3] sm:$0x1] %v927
    // Predicated region
    $region38: #{tpu_custom_call.1} parent=1 // pred_check
      _
    $region39: #{tpu_custom_call.1} parent=1 // pred_check_branch
      %931 = sbr.rel (0) target = $region41
    $region40: #{tpu_custom_call.1} parent=1 // pred_region
      %s933 = ssub.s32 16, 16
      %934 = vsyncadd [#allocation4], %s933
      %s936 = sshll.u32 [#allocation3], 4
      %s937 = int_to_ptr.vmem [resolvable:$true] %s936
      %939 = dma.vmem_to_hbm [thread:$0]  %s937, 16, %s9, [#allocation4]
    $region41: #{tpu_custom_call.1} parent=1 // pred_fallthru
      _
    // Predicated region
    $region42: #{tpu_custom_call.1} parent=1 // pred_check
      _
    $region43: #{tpu_custom_call.1} parent=1 // pred_check_branch
      %941 = sbr.rel (0) target = $region45
    $region44: #{tpu_custom_call.1} parent=1 // pred_region
      %942 = dma.done [#allocation4], 16
    $region45: #{tpu_custom_call.1} parent=1 // pred_fallthru
      _
    %943 = vsyncpa [#allocation4], 1

</llo_original>
